<compile_context>
chip_gen: v7x
topology: tpu7x:2x2x1
jax: 0.10.0
libtpu: 0.0.40
codegen_flags: <defaults>
</compile_context>

<pallas_src>
import functools

import jax
import jax.numpy as jnp
from jax import lax
from jax.experimental import pallas as pl
from jax.experimental.pallas import tpu as pltpu


# --------------------------------------------------------------------------
# Pallas kernel: 3x3 conv (stride 1, pad 1), bias + activation fused.
# Grid = (batch, row_tiles).  All operands are BlockSpec-pipelined.
# --------------------------------------------------------------------------
def _conv3x3_kernel(xc_ref, xu_ref, xd_ref, w_ref, b_ref, o_ref, *, act, gain):
    """One row tile of a fused 3x3 conv.

    xc_ref: (1, TH, W, Cin)  centre rows of the tile (unpadded input)
    xu_ref: (1, 1,  W, Cin)  row above the tile (index-map clamped at border)
    xd_ref: (1, 1,  W, Cin)  row below the tile (index-map clamped at border)
    w_ref : (3, 3*Cin, Cout) weights; w_ref[dx][dy*Cin + ci, co]
    b_ref : (1, 1, Cout)     bias (f32)
    o_ref : (1, TH, W, Cout) output tile
    """
    TH, W, Cin = xc_ref.shape[1], xc_ref.shape[2], xc_ref.shape[3]
    Cout = w_ref.shape[2]
    r = pl.program_id(1)
    R = pl.num_programs(1)

    xc = xc_ref[0]                                        # (TH, W, Cin) bf16
    # Halo rows: the index map clamps at the border, mask them to zero here.
    top = xu_ref[0] * (r > 0).astype(xc.dtype)            # (1, W, Cin)
    bot = xd_ref[0] * (r < R - 1).astype(xc.dtype)        # (1, W, Cin)
    if TH > 1:
        x_up = jnp.concatenate([top, xc[:TH - 1]], axis=0)    # rows i-1
        x_dn = jnp.concatenate([xc[1:], bot], axis=0)         # rows i+1
    else:
        x_up, x_dn = top, bot

    # Fold dy into K: a single 3-way channel concat -> (TH*W, 3*Cin) patch.
    patch = jnp.concatenate([x_up, xc, x_dn], axis=-1).reshape(TH * W, 3 * Cin)

    # dx = 0 tap (centre column): straight matmul, f32 accumulate.
    acc = jnp.dot(patch, w_ref[1],
                  preferred_element_type=jnp.float32).reshape(TH, W, Cout)
    if W > 1:
        # dx = -1 / +1 taps: same lhs; shift the f32 output columns with an
        # XLU 32-bit sublane roll and zero the wrapped edge column.
        t0 = jnp.dot(patch, w_ref[0],
                     preferred_element_type=jnp.float32).reshape(TH, W, Cout)
        t2 = jnp.dot(patch, w_ref[2],
                     preferred_element_type=jnp.float32).reshape(TH, W, Cout)
        col = lax.broadcasted_iota(jnp.int32, (TH, W, Cout), 1)
        t0 = jnp.where(col == 0, 0.0, pltpu.roll(t0, shift=1, axis=1))
        t2 = jnp.where(col == W - 1, 0.0, pltpu.roll(t2, shift=W - 1, axis=1))
        acc = acc + t0 + t2

    acc = acc + b_ref[...]                    # (1, 1, Cout) broadcast
    if act == "lrelu":                        # nn.LeakyReLU(0.2)
        acc = jnp.where(acc >= 0, acc, 0.2 * acc)
    elif act == "tanh":                       # final nn.Tanh() fused with *gain
        acc = jnp.tanh(acc) * gain
    # act == "none": linear
    o_ref[0] = acc.astype(o_ref.dtype)
    # TODO(synk): lane-dense (W*Cout) output packing for the 2-channel head.


def _vmem_budget():
    """(row-tile byte budget, vmem_limit_bytes), derived from the hardware."""
    cap = 64 * 1024 * 1024                    # conservative fallback (v7x-sized)
    try:
        cap = int(pltpu.get_tpu_info().vmem_capacity_bytes)
    except Exception:
        pass
    limit = max(32 * 1024 * 1024, min((cap * 3) // 4, cap - (16 << 20)))
    return limit // 2, limit                  # ~48/96 MiB limit on v7x / v5e-v6e


def _pick_tile_rows(H, W, Cin, Cout, out_bytes, budget):
    """Largest divisor of H whose per-step working set (pipeline buffers plus
    in-kernel transients) fits the budget."""
    def tile_bytes(th):
        inp = 2 * th * W * Cin * 2 + 4 * W * Cin * 2       # centre (x2) + halo rows
        outp = 2 * th * W * Cout * out_bytes               # output (x2)
        wgt = 2 * 9 * Cin * Cout * 2 + 8 * Cout            # resident weights + bias
        vals = 6 * th * W * Cin * 2                        # xc/x_up/x_dn + 3*Cin patch
        f32s = 7 * th * W * Cout * 4                       # acc/t0/t2 + rolls + iota
        return inp + outp + wgt + vals + f32s

    best = 1
    for th in range(1, H + 1):
        if H % th == 0 and tile_bytes(th) <= budget:
            best = th
    return best


def conv3x3(x, w, b, *, act="lrelu", gain=1.0, out_dtype=None, tile_rows=None):
    """Fused 3x3 conv (stride 1, pad 1) + bias + activation.

    x: (N, H, W, Cin) activations (cast to bf16), w: (3, 3, Cin, Cout) f32
    (HWIO, cross-correlation like nn.Conv2d), b: (Cout,) f32.
    Returns (N, H, W, Cout) in `out_dtype` (default bf16).
    """
    N, H, W, Cin = x.shape
    Cout = w.shape[-1]
    out_dtype = jnp.bfloat16 if out_dtype is None else out_dtype
    budget, vmem_limit = _vmem_budget()
    TH = tile_rows if tile_rows is not None else _pick_tile_rows(
        H, W, Cin, Cout, jnp.dtype(out_dtype).itemsize, budget)
    assert H % TH == 0, (H, TH)
    R = H // TH

    x = x.astype(jnp.bfloat16)
    # (dy, dx, Cin, Cout) -> (dx, dy*Cin, Cout): w_r[dx] rows match the patch's
    # (dy-major, cin) channel order.
    w_r = jnp.transpose(w, (1, 0, 2, 3)).reshape(3, 3 * Cin, Cout).astype(jnp.bfloat16)
    b_r = b.reshape(1, 1, Cout).astype(jnp.float32)

    kern = functools.partial(_conv3x3_kernel, act=act, gain=float(gain))
    return pl.pallas_call(
        kern,
        out_shape=jax.ShapeDtypeStruct((N, H, W, Cout), out_dtype),
        grid=(N, R),
        in_specs=[
            # centre rows of the tile
            pl.BlockSpec((1, TH, W, Cin), lambda n, r: (n, r, 0, 0)),
            # 1-row halo above / below, clamped at the image border
            pl.BlockSpec((1, 1, W, Cin),
                         lambda n, r: (n, jnp.maximum(r * TH - 1, 0), 0, 0)),
            pl.BlockSpec((1, 1, W, Cin),
                         lambda n, r: (n, jnp.minimum(r * TH + TH, H - 1), 0, 0)),
            # weights / bias stay resident in VMEM (constant index maps)
            pl.BlockSpec((3, 3 * Cin, Cout), lambda n, r: (0, 0, 0)),
            pl.BlockSpec((1, 1, Cout), lambda n, r: (0, 0, 0)),
        ],
        out_specs=pl.BlockSpec((1, TH, W, Cout), lambda n, r: (n, r, 0, 0)),
        compiler_params=pltpu.CompilerParams(
            dimension_semantics=("parallel", "parallel"),
            vmem_limit_bytes=vmem_limit),
    )(x, x, x, w_r, b_r)


# --------------------------------------------------------------------------
# Cheap glue ops kept in plain JAX (gather-free).
# --------------------------------------------------------------------------
def maxpool2(x):
    # nn.MaxPool2d(2) on NHWC.
    # TODO(synk): fuse the 2x2 maxpool into the preceding conv's epilogue.
    N, H, W, C = x.shape
    return x.reshape(N, H // 2, 2, W // 2, 2, C).max(axis=(2, 4))


def bilinear_up2(x):
    # 2x bilinear upsample, align_corners=False.  Static 0.25/0.75 weights via
    # shifted adds (no gathers), computed in the input dtype.
    # TODO(synk): fold the fixed-weight 2x upsample into the next conv's fetch.
    N, H, W, C = x.shape
    up = jnp.concatenate([x[:, :1], x[:, :-1]], axis=1)       # row i-1 (clamped)
    dn = jnp.concatenate([x[:, 1:], x[:, -1:]], axis=1)       # row i+1 (clamped)
    x = jnp.stack([0.25 * up + 0.75 * x, 0.75 * x + 0.25 * dn],
                  axis=2).reshape(N, 2 * H, W, C)
    lf = jnp.concatenate([x[:, :, :1], x[:, :, :-1]], axis=2)
    rt = jnp.concatenate([x[:, :, 1:], x[:, :, -1:]], axis=2)
    x = jnp.stack([0.25 * lf + 0.75 * x, 0.75 * x + 0.25 * rt],
                  axis=3).reshape(N, 2 * H, 2 * W, C)
    return x


# --------------------------------------------------------------------------
# FNet parameters and forward pass.
# --------------------------------------------------------------------------
def init_fnet_params(key, channel):
    specs = []
    f, in_c = 32, channel * 2
    for _ in range(3):                       # encoder blocks
        specs += [(in_c, f), (f, f)]
        in_c, f = f, f * 2
    for _ in range(3):                       # decoder blocks
        specs += [(in_c, f), (f, f)]
        in_c, f = f, f // 2
    specs += [(in_c, f), (f, 2)]             # head

    params = []
    keys = jax.random.split(key, len(specs))
    for k, (ci, co) in zip(keys, specs):
        std = (2.0 / (ci * 9)) ** 0.5        # kaiming-ish, deterministic
        w = std * jax.random.normal(k, (3, 3, ci, co), jnp.float32)
        b = jnp.zeros((co,), jnp.float32)
        params.append((w, b))
    return params


def fnet_forward(params, *inputs, gain=32.0):
    x = jnp.concatenate(inputs, axis=1)          # torch.cat on channel dim (NCHW)
    x = jnp.transpose(x, (0, 2, 3, 1))           # NCHW -> NHWC (channels on lanes)
    N, H, W, _ = x.shape
    assert H % 8 == 0 and W % 8 == 0, "FNet needs H, W divisible by 8 (3x 2x-pool)"
    x = x.astype(jnp.bfloat16)

    p = iter(params)
    # TODO(synk): pack W*Cin onto the lane axis for the Cin=4 first conv.
    for _ in range(3):                           # encoder: conv, conv, maxpool
        w, b = next(p); x = conv3x3(x, w, b, act="lrelu")
        w, b = next(p); x = conv3x3(x, w, b, act="lrelu")
        x = maxpool2(x)
    for _ in range(3):                           # decoder: conv, conv, upsample
        w, b = next(p); x = conv3x3(x, w, b, act="lrelu")
        w, b = next(p); x = conv3x3(x, w, b, act="lrelu")
        x = bilinear_up2(x)
    w, b = next(p); x = conv3x3(x, w, b, act="lrelu")
    w, b = next(p); x = conv3x3(x, w, b, act="tanh", gain=gain,
                                out_dtype=jnp.float32)       # tanh*gain fused, f32
    return jnp.transpose(x, (0, 3, 1, 2))        # back to NCHW


# --------------------------------------------------------------------------
# Test references (plain JAX, used only for correctness checks in __main__).
# --------------------------------------------------------------------------
def _conv_ref(x_nhwc_bf16, w, b):
    ref = jax.lax.conv_general_dilated(
        x_nhwc_bf16.astype(jnp.float32),
        w.astype(jnp.bfloat16).astype(jnp.float32),
        window_strides=(1, 1), padding="SAME",
        dimension_numbers=("NHWC", "HWIO", "NHWC"))
    ref = ref + b[None, None, None, :]
    return jnp.where(ref >= 0, ref, 0.2 * ref)


def _bilinear_up2_ref(x):
    N, H, W, C = x.shape

    def grid(size):
        src = (jnp.arange(2 * size, dtype=jnp.float32) + 0.5) / 2.0 - 0.5
        i0 = jnp.floor(src)
        frac = (src - i0).astype(x.dtype)
        lo = jnp.clip(i0, 0, size - 1).astype(jnp.int32)
        hi = jnp.clip(i0 + 1, 0, size - 1).astype(jnp.int32)
        return lo, hi, frac

    h0, h1, fh = grid(H)
    w0, w1, fw = grid(W)
    xh = (x[:, h0] * (1.0 - fh)[None, :, None, None]
          + x[:, h1] * fh[None, :, None, None])
    return (xh[:, :, w0] * (1.0 - fw)[None, None, :, None]
            + xh[:, :, w1] * fw[None, None, :, None])


if __name__ == "__main__":
    key = jax.random.PRNGKey(0)
    channel, N, H, W = 2, 2, 16, 16
    k1, k2, kp, ku, kc = jax.random.split(key, 5)
    x0 = jax.random.normal(k1, (N, channel, H, W), jnp.float32)
    x1 = jax.random.normal(k2, (N, channel, H, W), jnp.float32)
    params = init_fnet_params(kp, channel)

    # Kernel-level check 1: row-tiled (R=4: interior + border tiles, clamped
    # halo fetch, border masking) fused conv vs lax.conv, Cin=4.
    x_nhwc = jnp.transpose(jnp.concatenate([x0, x1], axis=1),
                           (0, 2, 3, 1)).astype(jnp.bfloat16)
    w0, b0 = params[0]
    got = conv3x3(x_nhwc, w0, b0, act="lrelu", tile_rows=4).astype(jnp.float32)
    ref = _conv_ref(x_nhwc, w0, b0)
    assert jnp.allclose(got, ref, atol=5e-2, rtol=5e-2), \
        float(jnp.max(jnp.abs(got - ref)))

    # Kernel-level check 2: deeper-channel layer (Cin=32 -> Cout=64) at W=8.
    x2 = jax.random.normal(kc, (1, 8, 8, 32), jnp.float32).astype(jnp.bfloat16)
    w2, b2 = params[2]
    got2 = conv3x3(x2, w2, b2, act="lrelu", tile_rows=4).astype(jnp.float32)
    ref2 = _conv_ref(x2, w2, b2)
    assert jnp.allclose(got2, ref2, atol=5e-2, rtol=5e-2), \
        float(jnp.max(jnp.abs(got2 - ref2)))

    # Gather-free upsample matches the align_corners=False bilinear reference.
    u = jax.random.normal(ku, (1, 4, 6, 3), jnp.float32)
    assert jnp.allclose(bilinear_up2(u), _bilinear_up2_ref(u), atol=1e-5)

    # Full forward.
    fwd = jax.jit(lambda p, a, b: fnet_forward(p, a, b, gain=32.0))
    out = fwd(params, x0, x1)
    jax.block_until_ready(out)

    assert out.shape == (N, 2, H, W), out.shape
    assert out.dtype == jnp.float32
    assert bool(jnp.all(jnp.isfinite(out)))
    assert float(jnp.max(jnp.abs(out))) <= 32.0 + 1e-3   # |tanh| * gain bound
    print("KERNEL_OK")
</pallas_src>

<mosaic_0001>
module attributes {stable_mosaic.version = 11 : i64} {
  func.func @_conv3x3_kernel(%arg0: i32, %arg1: i32, %arg2: memref<1x4x16x4xbf16, #tpu.memory_space<vmem>>, %arg3: memref<1x1x16x4xbf16, #tpu.memory_space<vmem>>, %arg4: memref<1x1x16x4xbf16, #tpu.memory_space<vmem>>, %arg5: memref<3x12x32xbf16, #tpu.memory_space<vmem>>, %arg6: memref<1x1x32xf32, #tpu.memory_space<vmem>>, %arg7: memref<1x4x16x32xbf16, #tpu.memory_space<vmem>>) attributes {dimension_semantics = [#tpu.dimension_semantics<parallel>, #tpu.dimension_semantics<parallel>], iteration_bounds = array<i64: 2, 4>, scalar_prefetch = 0 : i64, scratch_operands = 0 : i64, tpu.core_type = #tpu.core_type<tc>, window_params = [{transform_indices = @transform_0, window_bounds = array<i64: 1, 4, 16, 4>}, {transform_indices = @transform_1, window_bounds = array<i64: 1, 1, 16, 4>}, {transform_indices = @transform_2, window_bounds = array<i64: 1, 1, 16, 4>}, {pipeline_mode = #tpu.pipeline_mode<synchronous>, transform_indices = @transform_3, window_bounds = array<i64: 3, 12, 32>}, {pipeline_mode = #tpu.pipeline_mode<synchronous>, transform_indices = @transform_4, window_bounds = array<i64: 1, 1, 32>}, {transform_indices = @transform_5, window_bounds = array<i64: 1, 4, 16, 32>}]} {
    %c0 = arith.constant 0 : index
    %c0_0 = arith.constant 0 : index
    %c0_1 = arith.constant 0 : index
    %c0_2 = arith.constant 0 : index
    %0 = vector.load %arg2[%c0, %c0_0, %c0_1, %c0_2] : memref<1x4x16x4xbf16, #tpu.memory_space<vmem>>, vector<1x4x16x4xbf16>
    %1 = vector.shape_cast %0 : vector<1x4x16x4xbf16> to vector<4x16x4xbf16>
    %c0_3 = arith.constant 0 : index
    %c0_4 = arith.constant 0 : index
    %c0_5 = arith.constant 0 : index
    %c0_6 = arith.constant 0 : index
    %2 = vector.load %arg3[%c0_3, %c0_4, %c0_5, %c0_6] : memref<1x1x16x4xbf16, #tpu.memory_space<vmem>>, vector<1x1x16x4xbf16>
    %3 = vector.shape_cast %2 : vector<1x1x16x4xbf16> to vector<1x16x4xbf16>
    %c0_i32 = arith.constant 0 : i32
    %4 = arith.cmpi sgt, %arg1, %c0_i32 : i32
    %5 = arith.extui %4 : i1 to i32
    %6 = arith.sitofp %5 : i32 to f32
    %7 = arith.truncf %6 : f32 to bf16
    %8 = vector.broadcast %7 : bf16 to vector<1x16x4xbf16>
    %9 = arith.mulf %3, %8 : vector<1x16x4xbf16>
    %c0_7 = arith.constant 0 : index
    %c0_8 = arith.constant 0 : index
    %c0_9 = arith.constant 0 : index
    %c0_10 = arith.constant 0 : index
    %10 = vector.load %arg4[%c0_7, %c0_8, %c0_9, %c0_10] : memref<1x1x16x4xbf16, #tpu.memory_space<vmem>>, vector<1x1x16x4xbf16>
    %11 = vector.shape_cast %10 : vector<1x1x16x4xbf16> to vector<1x16x4xbf16>
    %c3_i32 = arith.constant 3 : i32
    %12 = arith.cmpi slt, %arg1, %c3_i32 : i32
    %13 = arith.extui %12 : i1 to i32
    %14 = arith.sitofp %13 : i32 to f32
    %15 = arith.truncf %14 : f32 to bf16
    %16 = vector.broadcast %15 : bf16 to vector<1x16x4xbf16>
    %17 = arith.mulf %11, %16 : vector<1x16x4xbf16>
    %18 = vector.extract_strided_slice %1 {offsets = [0, 0, 0], sizes = [3, 16, 4], strides = [1, 1, 1]} : vector<4x16x4xbf16> to vector<3x16x4xbf16>
    %19 = tpu.concatenate %9, %18 in 0 : vector<1x16x4xbf16>, vector<3x16x4xbf16> -> vector<4x16x4xbf16>
    %20 = vector.extract_strided_slice %1 {offsets = [1, 0, 0], sizes = [3, 16, 4], strides = [1, 1, 1]} : vector<4x16x4xbf16> to vector<3x16x4xbf16>
    %21 = tpu.concatenate %20, %17 in 0 : vector<3x16x4xbf16>, vector<1x16x4xbf16> -> vector<4x16x4xbf16>
    %22 = tpu.concatenate %19, %1, %21 in 2 : vector<4x16x4xbf16>, vector<4x16x4xbf16>, vector<4x16x4xbf16> -> vector<4x16x12xbf16>
    %23 = vector.shape_cast %22 : vector<4x16x12xbf16> to vector<64x12xbf16>
    %c1 = arith.constant 1 : index
    %c0_11 = arith.constant 0 : index
    %c0_12 = arith.constant 0 : index
    %24 = vector.load %arg5[%c1, %c0_11, %c0_12] : memref<3x12x32xbf16, #tpu.memory_space<vmem>>, vector<1x12x32xbf16>
    %25 = vector.shape_cast %24 : vector<1x12x32xbf16> to vector<12x32xbf16>
    %cst = arith.constant dense<0.000000e+00> : vector<64x32xf32>
    %26 = tpu.matmul %23, %25, %cst {dimension_numbers = #tpu.dot_dimension_numbers<[1], [0], [0], [1], [0, 0, 1, 1], [], []>} : vector<64x12xbf16>, vector<12x32xbf16>, vector<64x32xf32> -> vector<64x32xf32>
    %27 = vector.shape_cast %26 : vector<64x32xf32> to vector<4x16x32xf32>
    %c0_13 = arith.constant 0 : index
    %c0_14 = arith.constant 0 : index
    %c0_15 = arith.constant 0 : index
    %28 = vector.load %arg5[%c0_13, %c0_14, %c0_15] : memref<3x12x32xbf16, #tpu.memory_space<vmem>>, vector<1x12x32xbf16>
    %29 = vector.shape_cast %28 : vector<1x12x32xbf16> to vector<12x32xbf16>
    %cst_16 = arith.constant dense<0.000000e+00> : vector<64x32xf32>
    %30 = tpu.matmul %23, %29, %cst_16 {dimension_numbers = #tpu.dot_dimension_numbers<[1], [0], [0], [1], [0, 0, 1, 1], [], []>} : vector<64x12xbf16>, vector<12x32xbf16>, vector<64x32xf32> -> vector<64x32xf32>
    %31 = vector.shape_cast %30 : vector<64x32xf32> to vector<4x16x32xf32>
    %c2 = arith.constant 2 : index
    %c0_17 = arith.constant 0 : index
    %c0_18 = arith.constant 0 : index
    %32 = vector.load %arg5[%c2, %c0_17, %c0_18] : memref<3x12x32xbf16, #tpu.memory_space<vmem>>, vector<1x12x32xbf16>
    %33 = vector.shape_cast %32 : vector<1x12x32xbf16> to vector<12x32xbf16>
    %cst_19 = arith.constant dense<0.000000e+00> : vector<64x32xf32>
    %34 = tpu.matmul %23, %33, %cst_19 {dimension_numbers = #tpu.dot_dimension_numbers<[1], [0], [0], [1], [0, 0, 1, 1], [], []>} : vector<64x12xbf16>, vector<12x32xbf16>, vector<64x32xf32> -> vector<64x32xf32>
    %35 = vector.shape_cast %34 : vector<64x32xf32> to vector<4x16x32xf32>
    %36 = tpu.iota {dimensions = array<i32: 1>} : vector<4x16x32xi32>
    %c0_i32_20 = arith.constant 0 : i32
    %37 = vector.broadcast %c0_i32_20 : i32 to vector<4x16x32xi32>
    %38 = arith.cmpi eq, %36, %37 : vector<4x16x32xi32>
    %c1_i32 = arith.constant 1 : i32
    %39 = tpu.dynamic_rotate %31 by %c1_i32 dim 1 : vector<4x16x32xf32>, i32 -> vector<4x16x32xf32>
    %cst_21 = arith.constant 0.000000e+00 : f32
    %40 = vector.broadcast %cst_21 : f32 to vector<4x16x32xf32>
    %41 = arith.select %38, %40, %39 : vector<4x16x32xi1>, vector<4x16x32xf32>
    %c15_i32 = arith.constant 15 : i32
    %42 = vector.broadcast %c15_i32 : i32 to vector<4x16x32xi32>
    %43 = arith.cmpi eq, %36, %42 : vector<4x16x32xi32>
    %c15_i32_22 = arith.constant 15 : i32
    %44 = tpu.dynamic_rotate %35 by %c15_i32_22 dim 1 : vector<4x16x32xf32>, i32 -> vector<4x16x32xf32>
    %cst_23 = arith.constant 0.000000e+00 : f32
    %45 = vector.broadcast %cst_23 : f32 to vector<4x16x32xf32>
    %46 = arith.select %43, %45, %44 : vector<4x16x32xi1>, vector<4x16x32xf32>
    %47 = arith.addf %27, %41 : vector<4x16x32xf32>
    %48 = arith.addf %47, %46 : vector<4x16x32xf32>
    %c0_24 = arith.constant 0 : index
    %c0_25 = arith.constant 0 : index
    %c0_26 = arith.constant 0 : index
    %49 = vector.load %arg6[%c0_24, %c0_25, %c0_26] : memref<1x1x32xf32, #tpu.memory_space<vmem>>, vector<1x1x32xf32>
    %50 = vector.broadcast %49 : vector<1x1x32xf32> to vector<4x16x32xf32>
    %51 = arith.addf %48, %50 : vector<4x16x32xf32>
    %cst_27 = arith.constant 0.000000e+00 : f32
    %52 = vector.broadcast %cst_27 : f32 to vector<4x16x32xf32>
    %53 = arith.cmpf oge, %51, %52 : vector<4x16x32xf32>
    %cst_28 = arith.constant 2.000000e-01 : f32
    %54 = vector.broadcast %cst_28 : f32 to vector<4x16x32xf32>
    %55 = arith.mulf %54, %51 : vector<4x16x32xf32>
    %56 = arith.select %53, %51, %55 : vector<4x16x32xi1>, vector<4x16x32xf32>
    %57 = arith.truncf %56 : vector<4x16x32xf32> to vector<4x16x32xbf16>
    %c0_29 = arith.constant 0 : index
    %c0_30 = arith.constant 0 : index
    %c0_31 = arith.constant 0 : index
    %c0_32 = arith.constant 0 : index
    %58 = vector.load %arg7[%c0_29, %c0_30, %c0_31, %c0_32] : memref<1x4x16x32xbf16, #tpu.memory_space<vmem>>, vector<1x4x16x32xbf16>
    %59 = vector.shape_cast %58 : vector<1x4x16x32xbf16> to vector<4x16x32xbf16>
    %60 = vector.shape_cast %57 : vector<4x16x32xbf16> to vector<1x4x16x32xbf16>
    tpu.vector_store %arg7[%c0_29, %c0_30, %c0_31, %c0_32], %60 {strides = array<i32>} : memref<1x4x16x32xbf16, #tpu.memory_space<vmem>>, vector<1x4x16x32xbf16>,
    return
  }
  func.func @transform_0(%arg0: i32, %arg1: i32) -> (i32, i32, i32, i32) {
    %c0_i32 = arith.constant 0 : i32
    %c0_i32_0 = arith.constant 0 : i32
    %c0_i32_1 = arith.constant 0 : i32
    return %arg0, %arg1, %c0_i32, %c0_i32_0 : i32, i32, i32, i32
  }
  func.func @transform_1(%arg0: i32, %arg1: i32) -> (i32, i32, i32, i32) {
    %c4_i32 = arith.constant 4 : i32
    %0 = arith.muli %arg1, %c4_i32 : i32
    %c1_i32 = arith.constant 1 : i32
    %1 = arith.subi %0, %c1_i32 : i32
    %c0_i32 = arith.constant 0 : i32
    %2 = arith.maxsi %1, %c0_i32 : i32
    %c0_i32_0 = arith.constant 0 : i32
    %c0_i32_1 = arith.constant 0 : i32
    %c0_i32_2 = arith.constant 0 : i32
    return %arg0, %2, %c0_i32_0, %c0_i32_1 : i32, i32, i32, i32
  }
  func.func @transform_2(%arg0: i32, %arg1: i32) -> (i32, i32, i32, i32) {
    %c4_i32 = arith.constant 4 : i32
    %0 = arith.muli %arg1, %c4_i32 : i32
    %c4_i32_0 = arith.constant 4 : i32
    %1 = arith.addi %0, %c4_i32_0 : i32
    %c15_i32 = arith.constant 15 : i32
    %2 = arith.minsi %1, %c15_i32 : i32
    %c0_i32 = arith.constant 0 : i32
    %c0_i32_1 = arith.constant 0 : i32
    %c0_i32_2 = arith.constant 0 : i32
    return %arg0, %2, %c0_i32, %c0_i32_1 : i32, i32, i32, i32
  }
  func.func @transform_3(%arg0: i32, %arg1: i32) -> (i32, i32, i32) {
    %c0_i32 = arith.constant 0 : i32
    %c0_i32_0 = arith.constant 0 : i32
    %c0_i32_1 = arith.constant 0 : i32
    %c0_i32_2 = arith.constant 0 : i32
    return %c0_i32, %c0_i32_0, %c0_i32_1 : i32, i32, i32
  }
  func.func @transform_4(%arg0: i32, %arg1: i32) -> (i32, i32, i32) {
    %c0_i32 = arith.constant 0 : i32
    %c0_i32_0 = arith.constant 0 : i32
    %c0_i32_1 = arith.constant 0 : i32
    %c0_i32_2 = arith.constant 0 : i32
    return %c0_i32, %c0_i32_0, %c0_i32_1 : i32, i32, i32
  }
  func.func @transform_5(%arg0: i32, %arg1: i32) -> (i32, i32, i32, i32) {
    %c0_i32 = arith.constant 0 : i32
    %c0_i32_0 = arith.constant 0 : i32
    %c0_i32_1 = arith.constant 0 : i32
    return %arg0, %arg1, %c0_i32, %c0_i32_0 : i32, i32, i32, i32
  }
}

</mosaic_0001>

<llo_original>
// kernel: tpu_custom_call.1
$region0: #{tpu_custom_call.1}
  #allocation0 [shape = 'u32[]', space=smem, size = 0x4, offset = 0x4, fixed_abs, tag = 'smem constant byte address 0x4 - core index']
  #allocation1 [shape = 'u32[144,128]{1,0:T(1,128)}', space=vmem, size = 0x12000, scoped, tag = 'internal scratch']
  %s0 = inlined_call_operand.vmem [shape: bf16[2,16,16,4], index: 0, kind: input, shape index: {}]
  %s1 = inlined_call_operand.vmem [shape: bf16[2,16,16,4], index: 1, kind: input, shape index: {}]
  %s2 = inlined_call_operand.vmem [shape: bf16[2,16,16,4], index: 2, kind: input, shape index: {}]
  %s3 = inlined_call_operand.vmem [shape: bf16[3,12,32], index: 3, kind: input, shape index: {}]
  %s4 = inlined_call_operand.vmem [shape: f32[1,1,32], index: 4, kind: input, shape index: {}]
  %s5 = inlined_call_operand.hbm [shape: bf16[2,16,16,32], index: 5, kind: output, shape index: {}]
  %s6 = sld [smem:[#allocation0]]
  $region53: #{tpu_custom_call.1} parent=0
    _
  %s8 = ssub.s32 1, %s6
  %s9 = scalar_select 0, %s8, %s6
  $region1: #{tpu_custom_call.1} parent=0
    #allocation2 [shape = 'u8[32768]{0}', space=vmem, size = 0x8000, scoped, tag = 'output window, operand 0']
    #allocation3 [shape = 's32[2]{0}', space=sflag, size = 0x8, scoped, tag = 'scoped memory for tpu_custom_call.1']
    %10 = vsyncpa [#allocation3], 0
    %s11 = scalar_lea.sflag [#allocation3], 1
    %12 = vsyncpa %s11, 0
    loop: start=0, step=1, limit=10
    $region2: #{tpu_custom_call.1} parent=1 // loop_pre_header
      _
    $region3: #{tpu_custom_call.1} parent=1 // loop_header
      %s14 = sphi 0, %s18
      %p15 = scmp.ge.s32.totalorder %s14, 10
      %s21 = sphi 0, %s33
      %s22 = sphi 0, %s29
      %s23 = sphi 0, %s21
      %s24 = sphi 0, %s22
      %s25 = sphi 0, %s23
      %s26 = sphi 0, %s24
      %s38 = sphi 0, %s40
      %s41 = sphi 0, %s38
      %s42 = sphi 0, %s41
      %s58 = sphi 0, %s42
      %s74 = sphi 0, %s76
      %s77 = sphi 0, %s74
      %s78 = sphi 0, %s77
      %s94 = sphi 0, %s78
      %s110 = sphi 0, %s112
      %s113 = sphi 0, %s110
      %s114 = sphi 0, %s113
      %s130 = sphi 0, %s114
      %s134 = sphi 0, %s134
      %s136 = sphi 0, %s134
      %s137 = sphi 0, %s136
      %s151 = sphi 0, %s137
      %s155 = sphi 0, %s155
      %s157 = sphi 0, %s155
      %s158 = sphi 0, %s157
      %s172 = sphi 0, %s158
      %s180 = sphi 0, %s182
      %s183 = sphi 0, %s180
      %s184 = sphi 0, %s183
      %s200 = sphi 0, %s184
    $region4: #{tpu_custom_call.1} parent=1 // loop_header_branch
      %17 = sbr.rel (%p15) target = $region8
    $region5: #{tpu_custom_call.1} parent=1 // loop_body
      %s19 = ssub.s32 %s14, 1
      %s20 = ssub.s32 %s14, 2
      %s27 = sadd.s32 1, %s22
      %p28 = scmp.ge.s32.totalorder %s27, 4
      %s29 = scalar_select %p28, 0, %s27
      %s30 = sadd.s32 1, %s21
      %s31 = scalar_select %p28, %s30, %s21
      %p32 = scmp.ge.s32.totalorder %s31, 2
      %s33 = scalar_select %p32, 0, %s31
      %s34 = ssub.s32 %s21, %s33
      %s35 = ssub.s32 %s22, %s29
      %s36 = sor.u32 %s34, %s35
      %p37 = scmp.eq.s32.totalorder %s36, 0
      %s39 = sadd.s32 %s38, 1
      %s40 = scalar_select %p37, %s38, %s39
      %p43 = pneg %p37
      %p44 = scmp.eq.s32.totalorder %s14, 7
      %p45 = por %p43, %p44
      %p46 = scmp.ne.s32.totalorder %s38, %s41
      %p47 = scmp.eq.s32.totalorder %s14, 0
      %p48 = por %p46, %p47
      %p49 = scmp.ne.s32.totalorder %s38, %s41
      %p50 = scmp.eq.s32.totalorder %s19, 7
      %p51 = por %p49, %p50
      %p52 = scmp.ne.s32.totalorder %s41, %s42
      %p53 = scmp.eq.s32.totalorder %s19, 0
      %p54 = por %p52, %p53
      %p55 = scmp.ne.s32.totalorder %s41, %s42
      %p56 = scmp.eq.s32.totalorder %s20, 7
      %p57 = por %p55, %p56
      %p59 = scmp.ne.s32.totalorder %s42, %s58
      %p60 = scmp.eq.s32.totalorder %s20, 0
      %p61 = por %p59, %p60
      %s62 = smul.u32 %s22, 4
      %s63 = ssub.s32 %s62, 1
      %p64 = scmp.gt.s32.totalorder %s63, 0
      %s65 = scalar_select %p64, %s63, 0
      %s66 = smul.u32 %s29, 4
      %s67 = ssub.s32 %s66, 1
      %p68 = scmp.gt.s32.totalorder %s67, 0
      %s69 = scalar_select %p68, %s67, 0
      %s70 = ssub.s32 %s21, %s33
      %s71 = ssub.s32 %s65, %s69
      %s72 = sor.u32 %s70, %s71
      %p73 = scmp.eq.s32.totalorder %s72, 0
      %s75 = sadd.s32 %s74, 1
      %s76 = scalar_select %p73, %s74, %s75
      %p79 = pneg %p73
      %p80 = scmp.eq.s32.totalorder %s14, 7
      %p81 = por %p79, %p80
      %p82 = scmp.ne.s32.totalorder %s74, %s77
      %p83 = scmp.eq.s32.totalorder %s14, 0
      %p84 = por %p82, %p83
      %p85 = scmp.ne.s32.totalorder %s74, %s77
      %p86 = scmp.eq.s32.totalorder %s19, 7
      %p87 = por %p85, %p86
      %p88 = scmp.ne.s32.totalorder %s77, %s78
      %p89 = scmp.eq.s32.totalorder %s19, 0
      %p90 = por %p88, %p89
      %p91 = scmp.ne.s32.totalorder %s77, %s78
      %p92 = scmp.eq.s32.totalorder %s20, 7
      %p93 = por %p91, %p92
      %p95 = scmp.ne.s32.totalorder %s78, %s94
      %p96 = scmp.eq.s32.totalorder %s20, 0
      %p97 = por %p95, %p96
      %s98 = smul.u32 %s22, 4
      %s99 = sadd.s32 %s98, 4
      %p100 = scmp.lt.s32.totalorder %s99, 15
      %s101 = scalar_select %p100, %s99, 15
      %s102 = smul.u32 %s29, 4
      %s103 = sadd.s32 %s102, 4
      %p104 = scmp.lt.s32.totalorder %s103, 15
      %s105 = scalar_select %p104, %s103, 15
      %s106 = ssub.s32 %s21, %s33
      %s107 = ssub.s32 %s101, %s105
      %s108 = sor.u32 %s106, %s107
      %p109 = scmp.eq.s32.totalorder %s108, 0
      %s111 = sadd.s32 %s110, 1
      %s112 = scalar_select %p109, %s110, %s111
      %p115 = pneg %p109
      %p116 = scmp.eq.s32.totalorder %s14, 7
      %p117 = por %p115, %p116
      %p118 = scmp.ne.s32.totalorder %s110, %s113
      %p119 = scmp.eq.s32.totalorder %s14, 0
      %p120 = por %p118, %p119
      %p121 = scmp.ne.s32.totalorder %s110, %s113
      %p122 = scmp.eq.s32.totalorder %s19, 7
      %p123 = por %p121, %p122
      %p124 = scmp.ne.s32.totalorder %s113, %s114
      %p125 = scmp.eq.s32.totalorder %s19, 0
      %p126 = por %p124, %p125
      %p127 = scmp.ne.s32.totalorder %s113, %s114
      %p128 = scmp.eq.s32.totalorder %s20, 7
      %p129 = por %p127, %p128
      %p131 = scmp.ne.s32.totalorder %s114, %s130
      %p132 = scmp.eq.s32.totalorder %s20, 0
      %p133 = por %p131, %p132
      %s135 = sadd.s32 %s134, 1
      %p138 = scmp.eq.s32.totalorder %s14, 7
      %p139 = scmp.ne.s32.totalorder %s134, %s136
      %p140 = scmp.eq.s32.totalorder %s14, 0
      %p141 = por %p139, %p140
      %p142 = scmp.ne.s32.totalorder %s134, %s136
      %p143 = scmp.eq.s32.totalorder %s19, 7
      %p144 = por %p142, %p143
      %p145 = scmp.ne.s32.totalorder %s136, %s137
      %p146 = scmp.eq.s32.totalorder %s19, 0
      %p147 = por %p145, %p146
      %p148 = scmp.ne.s32.totalorder %s136, %s137
      %p149 = scmp.eq.s32.totalorder %s20, 7
      %p150 = por %p148, %p149
      %p152 = scmp.ne.s32.totalorder %s137, %s151
      %p153 = scmp.eq.s32.totalorder %s20, 0
      %p154 = por %p152, %p153
      %s156 = sadd.s32 %s155, 1
      %p159 = scmp.eq.s32.totalorder %s14, 7
      %p160 = scmp.ne.s32.totalorder %s155, %s157
      %p161 = scmp.eq.s32.totalorder %s14, 0
      %p162 = por %p160, %p161
      %p163 = scmp.ne.s32.totalorder %s155, %s157
      %p164 = scmp.eq.s32.totalorder %s19, 7
      %p165 = por %p163, %p164
      %p166 = scmp.ne.s32.totalorder %s157, %s158
      %p167 = scmp.eq.s32.totalorder %s19, 0
      %p168 = por %p166, %p167
      %p169 = scmp.ne.s32.totalorder %s157, %s158
      %p170 = scmp.eq.s32.totalorder %s20, 7
      %p171 = por %p169, %p170
      %p173 = scmp.ne.s32.totalorder %s158, %s172
      %p174 = scmp.eq.s32.totalorder %s20, 0
      %p175 = por %p173, %p174
      %s176 = ssub.s32 %s21, %s33
      %s177 = ssub.s32 %s22, %s29
      %s178 = sor.u32 %s176, %s177
      %p179 = scmp.eq.s32.totalorder %s178, 0
      %s181 = sadd.s32 %s180, 1
      %s182 = scalar_select %p179, %s180, %s181
      %p185 = pneg %p179
      %p186 = scmp.eq.s32.totalorder %s14, 7
      %p187 = por %p185, %p186
      %p188 = scmp.ne.s32.totalorder %s180, %s183
      %p189 = scmp.eq.s32.totalorder %s14, 0
      %p190 = por %p188, %p189
      %p191 = scmp.ne.s32.totalorder %s180, %s183
      %p192 = scmp.eq.s32.totalorder %s19, 7
      %p193 = por %p191, %p192
      %p194 = scmp.ne.s32.totalorder %s183, %s184
      %p195 = scmp.eq.s32.totalorder %s19, 0
      %p196 = por %p194, %p195
      %p197 = scmp.ne.s32.totalorder %s183, %s184
      %p198 = scmp.eq.s32.totalorder %s20, 7
      %p199 = por %p197, %p198
      %p201 = scmp.ne.s32.totalorder %s184, %s200
      %p202 = scmp.eq.s32.totalorder %s20, 0
      %p203 = por %p201, %p202
      %p204 = scmp.le.s32.totalorder 1, %s14
      %p205 = scmp.lt.s32.totalorder %s14, 9
      %p206 = pnand %p204, %p205
      %p207 = pneg %p206
      // Predicated region
      $region9: #{tpu_custom_call.1} parent=5 // pred_check
        _
      $region10: #{tpu_custom_call.1} parent=5 // pred_check_branch
        %209 = sbr.rel (%p206) target = $region12
      $region11: #{tpu_custom_call.1} parent=5 // pred_region
        %s210 = ssub.s32 %s14, 1
        // Predicated region
        $region13: #{tpu_custom_call.1} parent=11 // pred_check
          %p211 = pneg %p147
        $region14: #{tpu_custom_call.1} parent=11 // pred_check_branch
          %213 = sbr.rel (%p211) target = $region16
        $region15: #{tpu_custom_call.1} parent=11 // pred_region
          _
        $region16: #{tpu_custom_call.1} parent=11 // pred_fallthru
          _
        // Predicated region
        $region17: #{tpu_custom_call.1} parent=11 // pred_check
          %p214 = pneg %p168
        $region18: #{tpu_custom_call.1} parent=11 // pred_check_branch
          %216 = sbr.rel (%p214) target = $region20
        $region19: #{tpu_custom_call.1} parent=11 // pred_region
          _
        $region20: #{tpu_custom_call.1} parent=11 // pred_fallthru
          _
      $region12: #{tpu_custom_call.1} parent=5 // pred_fallthru
        _
      %p217 = scmp.lt.s32.totalorder %s14, 8
      // Predicated region
      $region21: #{tpu_custom_call.1} parent=5 // pred_check
        %p218 = pneg %p217
      $region22: #{tpu_custom_call.1} parent=5 // pred_check_branch
        %220 = sbr.rel (%p218) target = $region24
      $region23: #{tpu_custom_call.1} parent=5 // pred_region
        // Predicated region
        $region25: #{tpu_custom_call.1} parent=23 // pred_check
          %p221 = pneg %p48
        $region26: #{tpu_custom_call.1} parent=23 // pred_check_branch
          %223 = sbr.rel (%p221) target = $region28
        $region27: #{tpu_custom_call.1} parent=23 // pred_region
          %s224 = smul.u32 4, %s22
          %p225 = scmp.lt.s32.totalorder %s21, 1
          %s226 = scalar_select %p225, %s21, 1
          %p227 = scmp.lt.s32.totalorder %s224, 15
          %s228 = scalar_select %p227, %s224, 15
          %s229 = smul.addr %s228, 2
          %s230 = smul.addr %s226, 32
          %s231 = sadd.s32 %s229, %s230
          %s232 = smul.addr %s231, 4
          %s233 = scalar_lea.vmem %s0, %s232
          %s234 = smul.u32 4, %s22
        $region28: #{tpu_custom_call.1} parent=23 // pred_fallthru
          _
        // Predicated region
        $region29: #{tpu_custom_call.1} parent=23 // pred_check
          %p235 = pneg %p84
        $region30: #{tpu_custom_call.1} parent=23 // pred_check_branch
          %237 = sbr.rel (%p235) target = $region32
        $region31: #{tpu_custom_call.1} parent=23 // pred_region
          %s238 = smul.u32 %s22, 4
          %s239 = ssub.s32 %s238, 1
          %p240 = scmp.gt.s32.totalorder %s239, 0
          %s241 = scalar_select %p240, %s239, 0
          %p242 = scmp.lt.s32.totalorder %s21, 1
          %s243 = scalar_select %p242, %s21, 1
          %p244 = scmp.lt.s32.totalorder %s241, 15
          %s245 = scalar_select %p244, %s241, 15
          %s246 = smul.addr %s245, 2
          %s247 = smul.addr %s243, 32
          %s248 = sadd.s32 %s246, %s247
          %s249 = smul.addr %s248, 4
          %s250 = scalar_lea.vmem %s1, %s249
          %s251 = smul.u32 %s22, 4
          %s252 = ssub.s32 %s251, 1
          %p253 = scmp.gt.s32.totalorder %s252, 0
          %s254 = scalar_select %p253, %s252, 0
        $region32: #{tpu_custom_call.1} parent=23 // pred_fallthru
          _
        // Predicated region
        $region33: #{tpu_custom_call.1} parent=23 // pred_check
          %p255 = pneg %p120
        $region34: #{tpu_custom_call.1} parent=23 // pred_check_branch
          %257 = sbr.rel (%p255) target = $region36
        $region35: #{tpu_custom_call.1} parent=23 // pred_region
          %s258 = smul.u32 %s22, 4
          %s259 = sadd.s32 %s258, 4
          %p260 = scmp.lt.s32.totalorder %s259, 15
          %s261 = scalar_select %p260, %s259, 15
          %p262 = scmp.lt.s32.totalorder %s21, 1
          %s263 = scalar_select %p262, %s21, 1
          %p264 = scmp.lt.s32.totalorder %s261, 15
          %s265 = scalar_select %p264, %s261, 15
          %s266 = smul.addr %s265, 2
          %s267 = smul.addr %s263, 32
          %s268 = sadd.s32 %s266, %s267
          %s269 = smul.addr %s268, 4
          %s270 = scalar_lea.vmem %s2, %s269
          %s271 = smul.u32 %s22, 4
          %s272 = sadd.s32 %s271, 4
          %p273 = scmp.lt.s32.totalorder %s272, 15
          %s274 = scalar_select %p273, %s272, 15
        $region36: #{tpu_custom_call.1} parent=23 // pred_fallthru
          _
      $region24: #{tpu_custom_call.1} parent=5 // pred_fallthru
        _
      %p275 = scmp.le.s32.totalorder 1, %s14
      %p276 = scmp.lt.s32.totalorder %s14, 9
      %p277 = pnand %p275, %p276
      %p278 = pneg %p277
      // Predicated region
      $region37: #{tpu_custom_call.1} parent=5 // pred_check
        _
      $region38: #{tpu_custom_call.1} parent=5 // pred_check_branch
        %280 = sbr.rel (%p277) target = $region40
      $region39: #{tpu_custom_call.1} parent=5 // pred_region
        %s281 = ssub.s32 %s14, 1
        %s282 = smul.u32 4, %s24
        %p283 = scmp.lt.s32.totalorder %s23, 1
        %s284 = scalar_select %p283, %s23, 1
        %p285 = scmp.lt.s32.totalorder %s282, 15
        %s286 = scalar_select %p285, %s282, 15
        %s287 = smul.addr %s286, 2
        %s288 = smul.addr %s284, 32
        %s289 = sadd.s32 %s287, %s288
        %s290 = smul.addr %s289, 4
        %s291 = scalar_lea.vmem %s0, %s290
        %p292 = pneg %p54
        %p293 = pneg %p51
        %s294 = smul.u32 %s24, 4
        %s295 = ssub.s32 %s294, 1
        %p296 = scmp.gt.s32.totalorder %s295, 0
        %s297 = scalar_select %p296, %s295, 0
        %p298 = scmp.lt.s32.totalorder %s23, 1
        %s299 = scalar_select %p298, %s23, 1
        %p300 = scmp.lt.s32.totalorder %s297, 15
        %s301 = scalar_select %p300, %s297, 15
        %s302 = smul.addr %s301, 2
        %s303 = smul.addr %s299, 32
        %s304 = sadd.s32 %s302, %s303
        %s305 = smul.addr %s304, 4
        %s306 = scalar_lea.vmem %s1, %s305
        %p307 = pneg %p90
        %p308 = pneg %p87
        %s309 = smul.u32 %s24, 4
        %s310 = sadd.s32 %s309, 4
        %p311 = scmp.lt.s32.totalorder %s310, 15
        %s312 = scalar_select %p311, %s310, 15
        %p313 = scmp.lt.s32.totalorder %s23, 1
        %s314 = scalar_select %p313, %s23, 1
        %p315 = scmp.lt.s32.totalorder %s312, 15
        %s316 = scalar_select %p315, %s312, 15
        %s317 = smul.addr %s316, 2
        %s318 = smul.addr %s314, 32
        %s319 = sadd.s32 %s317, %s318
        %s320 = smul.addr %s319, 4
        %s321 = scalar_lea.vmem %s2, %s320
        %p322 = pneg %p126
        %p323 = pneg %p123
        %p324 = pneg %p147
        %p325 = pneg %p144
        %p326 = pneg %p168
        %p327 = pneg %p165
        %p328 = pneg %p196
        %p329 = pneg %p193
        %s330 = sand.u32 %s183, 1
        %s331 = scalar_lea.sflag [#allocation3], %s330
        %s332 = sand.u32 %s183, 1
        %s333 = smul.addr %s332, 32
        %s334 = scalar_lea.vmem [#allocation2], %s333
        %s335 = smul.u32 4, %s24
        %p336 = scmp.lt.s32.totalorder %s23, 1
        %s337 = scalar_select %p336, %s23, 1
        %p338 = scmp.lt.s32.totalorder %s335, 15
        %s339 = scalar_select %p338, %s335, 15
        %s340 = smul.addr %s339, 2
        %s341 = smul.addr %s337, 32
        %s342 = sadd.s32 %s340, %s341
        %s343 = smul.addr %s342, 4
        %s344 = scalar_lea.vmem %s0, %s343
        %s345 = smul.u32 4, %s24
        %s346 = smul.u32 %s24, 4
        %s347 = ssub.s32 %s346, 1
        %p348 = scmp.gt.s32.totalorder %s347, 0
        %s349 = scalar_select %p348, %s347, 0
        %p350 = scmp.lt.s32.totalorder %s23, 1
        %s351 = scalar_select %p350, %s23, 1
        %p352 = scmp.lt.s32.totalorder %s349, 15
        %s353 = scalar_select %p352, %s349, 15
        %s354 = smul.addr %s353, 2
        %s355 = smul.addr %s351, 32
        %s356 = sadd.s32 %s354, %s355
        %s357 = smul.addr %s356, 4
        %s358 = scalar_lea.vmem %s1, %s357
        %s359 = smul.u32 %s24, 4
        %s360 = ssub.s32 %s359, 1
        %p361 = scmp.gt.s32.totalorder %s360, 0
        %s362 = scalar_select %p361, %s360, 0
        %s363 = smul.u32 %s24, 4
        %s364 = sadd.s32 %s363, 4
        %p365 = scmp.lt.s32.totalorder %s364, 15
        %s366 = scalar_select %p365, %s364, 15
        %p367 = scmp.lt.s32.totalorder %s23, 1
        %s368 = scalar_select %p367, %s23, 1
        %p369 = scmp.lt.s32.totalorder %s366, 15
        %s370 = scalar_select %p369, %s366, 15
        %s371 = smul.addr %s370, 2
        %s372 = smul.addr %s368, 32
        %s373 = sadd.s32 %s371, %s372
        %s374 = smul.addr %s373, 4
        %s375 = scalar_lea.vmem %s2, %s374
        %s376 = smul.u32 %s24, 4
        %s377 = sadd.s32 %s376, 4
        %p378 = scmp.lt.s32.totalorder %s377, 15
        %s379 = scalar_select %p378, %s377, 15
        %s380 = smul.u32 4, %s24
        %v382 = vld [vmem:[%s344] sm:$0xf]
        %v383 = vld [vmem:[%s344 + $0x4] sm:$0xf]
        %v384 = vld [vmem:[%s344 + $0x8] sm:$0xf]
        %v385 = vld [vmem:[%s344 + $0xc] sm:$0xf]
        %v386 = vld [vmem:[%s344 + $0x10] sm:$0xf]
        %v387 = vld [vmem:[%s344 + $0x14] sm:$0xf]
        %v388 = vld [vmem:[%s344 + $0x18] sm:$0xf]
        %v389 = vld [vmem:[%s344 + $0x1c] sm:$0xf]
        %v390 = vld [vmem:[%s358] sm:$0xf]
        %v391 = vld [vmem:[%s358 + $0x4] sm:$0xf]
        %p392 = scmp.gt.s32.totalorder %s24, 0
        %s393 = scalar_select %p392, 1, 0
        %s394 = scvt.s32.f32 %s393
        %p396 = scmp.ne.f32.partialorder %s394, %s394
        %s397 = sshrl.u32 %s394, 16
        %s398 = sand.u32 %s397, 1
        %s399 = sadd.s32 32767, %s398
        %s400 = sadd.s32 %s394, %s399
        %s401 = sand.u32 %s400, 4294901760
        %s402 = scalar_select %p396, 2143289344, %s401
        %s404 = sshrl.u32 %s402, 16
        %s405 = sshll.u32 %s404, 16
        %s406 = sor.u32 %s404, %s405
        %v407 = vstv %s406
        %v409 = vmul.bf16 %v390, %v407
        %v410 = vmul.bf16 %v391, %v407
        %v411 = vld [vmem:[%s375] sm:$0xf]
        %v412 = vld [vmem:[%s375 + $0x4] sm:$0xf]
        %p413 = scmp.lt.s32.totalorder %s24, 3
        %s414 = scalar_select %p413, 1, 0
        %s415 = scvt.s32.f32 %s414
        %p417 = scmp.ne.f32.partialorder %s415, %s415
        %s418 = sshrl.u32 %s415, 16
        %s419 = sand.u32 %s418, 1
        %s420 = sadd.s32 32767, %s419
        %s421 = sadd.s32 %s415, %s420
        %s422 = sand.u32 %s421, 4294901760
        %s423 = scalar_select %p417, 2143289344, %s422
        %s425 = sshrl.u32 %s423, 16
        %s426 = sshll.u32 %s425, 16
        %s427 = sor.u32 %s425, %s426
        %v428 = vstv %s427
        %v430 = vmul.bf16 %v411, %v428
        %v431 = vmul.bf16 %v412, %v428
        %v440 = vunpack.c.l.b16 %v409
        %v441 = vunpack.c.l.b16 %v410
        %v442 = vunpack.c.l.b16 %v382
        %v443 = vunpack.c.l.b16 %v383
        %v444 = vunpack.c.l.b16 %v384
        %v445 = vunpack.c.l.b16 %v385
        %v446 = vunpack.c.l.b16 %v386
        %v447 = vunpack.c.l.b16 %v387
        %v448 = vpack.c.b16 %v441, %v440
        %v449 = vpack.c.b16 %v443, %v442
        %v450 = vpack.c.b16 %v445, %v444
        %v451 = vpack.c.b16 %v447, %v446
        %v454 = vunpack.c.l.b16 %v388
        %v455 = vunpack.c.l.b16 %v389
        %v456 = vpack.c.b16 %v455, %v454
        %457 = vrot.lane.b32.xlu0 %v449, 4
        %v458 = vpop.permute.xlu0 %457
        %459 = vrot.lane.b32.xlu0 %v450, 4
        %v460 = vpop.permute.xlu0 %459
        %461 = vrot.lane.b32.xlu0 %v451, 4
        %v462 = vpop.permute.xlu0 %461
        %463 = vrot.lane.b32.xlu0 %v456, 4
        %v464 = vpop.permute.xlu0 %463
        %v467 = vunpack.c.l.b16 %v430
        %v468 = vunpack.c.l.b16 %v431
        %v469 = vpack.c.b16 %v468, %v467
        %470 = vrot.lane.b32.xlu0 %v450, 8
        %v471 = vpop.permute.xlu0 %470
        %472 = vrot.lane.b32.xlu0 %v451, 8
        %v473 = vpop.permute.xlu0 %472
        %474 = vrot.lane.b32.xlu0 %v456, 8
        %v475 = vpop.permute.xlu0 %474
        %476 = vrot.lane.b32.xlu0 %v469, 8
        %v477 = vpop.permute.xlu0 %476
        %vm478 = vcmask 31744
        %v481 = vsel %vm478, %v448, %v458
        %v484 = vsel %vm478, %v449, %v460
        %v487 = vsel %vm478, %v450, %v462
        %v490 = vsel %vm478, %v451, %v464
        %vm491 = vcmask 64512
        %v493 = vsel %vm491, %v481, %v471
        %v495 = vsel %vm491, %v484, %v473
        %v497 = vsel %vm491, %v487, %v475
        %v499 = vsel %vm491, %v490, %v477
        %s500 = scalar_lea.vmem %s3, 8
        %v501 = vld [vmem:[%s500] sm:$0xf]
        %v502 = vld [vmem:[%s500 + $0x4] sm:$0x3]
        %v505 = vunpack.c.l.b16 %v501
        %v506 = vunpack.c.l.b16 %v502
        %v507 = vpack.c.b16 %v506, %v505
        %vm508 = vcmask 97280
        %v509 = vsel %vm508, %v493, 0
        %v511 = vsel %vm508, %v495, 0
        %v513 = vsel %vm508, %v497, 0
        %v515 = vsel %vm508, %v499, 0
        %vm517 = vcmask 1045504
        %v519 = vsel %vm517, %v507, 0
        %521 = vmatprep.subr.bf16.mxu0 0
        %522 = vmatpush1.bf16.msra.mxu0 %v519
        %523 = vmatprep.subr.bf16.mxu0 0
        %524 = vmatpush1.bf16.msra.mxu0 0
        %525 = vmatprep.subr.bf16.mxu0 0
        %526 = vmatpush1.bf16.msra.mxu0 0
        %527 = vmatprep.subr.bf16.mxu0 0
        %528 = vmatpush1.bf16.msra.mxu0 0
        %529 = vmatprep.subr.bf16.mxu0 0
        %530 = vmatpush1.bf16.msra.mxu0 0
        %531 = vmatprep.subr.bf16.mxu0 0
        %532 = vmatpush1.bf16.msra.mxu0 0
        %533 = vmatprep.subr.bf16.mxu0 0
        %534 = vmatpush1.bf16.msra.mxu0 0
        %535 = vmatprep.subr.bf16.mxu0 0
        %536 = vmatpush1.bf16.msra.mxu0 0
        %537 = vmatprep.subr.bf16.mxu0 0
        %538 = vmatpush1.bf16.msra.mxu0 0
        %539 = vmatprep.subr.bf16.mxu0 0
        %540 = vmatpush1.bf16.msra.mxu0 0
        %541 = vmatprep.subr.bf16.mxu0 0
        %542 = vmatpush1.bf16.msra.mxu0 0
        %543 = vmatprep.subr.bf16.mxu0 0
        %544 = vmatpush1.bf16.msra.mxu0 0
        %545 = vmatprep.subr.bf16.mxu0 0
        %546 = vmatpush1.bf16.msra.mxu0 0
        %547 = vmatprep.subr.bf16.mxu0 0
        %548 = vmatpush1.bf16.msra.mxu0 0
        %549 = vmatprep.subr.bf16.mxu0 0
        %550 = vmatpush1.bf16.msra.mxu0 0
        %551 = vmatprep.subr.bf16.mxu0 0
        %552 = vmatpush1.bf16.msra.mxu0 0
        %553 = vmatprep.mubr.bf16.mxu0 0
        %554 = vmatmul.mubr.bf16.gmra.mrb[0].mxu0 %v509
        %v555 = vpop.f32.mrb[0].mxu0
        %v556 = vadd.f32 0.0, %v555
        %v557 = vpop.f32.mrb[0].mxu0
        %v558 = vpop.f32.mrb[0].mxu0
        %v559 = vadd.f32 0.0, %v558
        %v560 = vpop.f32.mrb[0].mxu0
        %561 = vmatprep.mubr.bf16.mxu0 0
        %562 = vmatmul.mubr.bf16.gmra.mrb[0].mxu0 %v511
        %v563 = vpop.f32.mrb[0].mxu0
        %v564 = vadd.f32 0.0, %v563
        %v565 = vpop.f32.mrb[0].mxu0
        %v566 = vpop.f32.mrb[0].mxu0
        %v567 = vadd.f32 0.0, %v566
        %v568 = vpop.f32.mrb[0].mxu0
        %569 = vmatprep.mubr.bf16.mxu0 0
        %570 = vmatmul.mubr.bf16.gmra.mrb[0].mxu0 %v513
        %v571 = vpop.f32.mrb[0].mxu0
        %v572 = vadd.f32 0.0, %v571
        %v573 = vpop.f32.mrb[0].mxu0
        %v574 = vpop.f32.mrb[0].mxu0
        %v575 = vadd.f32 0.0, %v574
        %v576 = vpop.f32.mrb[0].mxu0
        %577 = vmatprep.mubr.bf16.mxu0 0
        %578 = vmatmul.mubr.bf16.gmra.mrb[0].mxu0 %v515
        %v579 = vpop.f32.mrb[0].mxu0
        %v580 = vadd.f32 0.0, %v579
        %v581 = vpop.f32.mrb[0].mxu0
        %v582 = vpop.f32.mrb[0].mxu0
        %v583 = vadd.f32 0.0, %v582
        %v584 = vpop.f32.mrb[0].mxu0
        %585 = vdwg.mxu0
        %v586 = vld [vmem:[%s3] sm:$0xf]
        %v587 = vld [vmem:[%s3 + $0x4] sm:$0x3]
        %v590 = vunpack.c.l.b16 %v586
        %v591 = vunpack.c.l.b16 %v587
        %v592 = vpack.c.b16 %v591, %v590
        %v594 = vsel %vm517, %v592, 0
        %596 = vmatprep.subr.bf16.mxu0 0
        %597 = vmatpush1.bf16.msra.mxu0 %v594
        %598 = vmatprep.subr.bf16.mxu0 0
        %599 = vmatpush1.bf16.msra.mxu0 0
        %600 = vmatprep.subr.bf16.mxu0 0
        %601 = vmatpush1.bf16.msra.mxu0 0
        %602 = vmatprep.subr.bf16.mxu0 0
        %603 = vmatpush1.bf16.msra.mxu0 0
        %604 = vmatprep.subr.bf16.mxu0 0
        %605 = vmatpush1.bf16.msra.mxu0 0
        %606 = vmatprep.subr.bf16.mxu0 0
        %607 = vmatpush1.bf16.msra.mxu0 0
        %608 = vmatprep.subr.bf16.mxu0 0
        %609 = vmatpush1.bf16.msra.mxu0 0
        %610 = vmatprep.subr.bf16.mxu0 0
        %611 = vmatpush1.bf16.msra.mxu0 0
        %612 = vmatprep.subr.bf16.mxu0 0
        %613 = vmatpush1.bf16.msra.mxu0 0
        %614 = vmatprep.subr.bf16.mxu0 0
        %615 = vmatpush1.bf16.msra.mxu0 0
        %616 = vmatprep.subr.bf16.mxu0 0
        %617 = vmatpush1.bf16.msra.mxu0 0
        %618 = vmatprep.subr.bf16.mxu0 0
        %619 = vmatpush1.bf16.msra.mxu0 0
        %620 = vmatprep.subr.bf16.mxu0 0
        %621 = vmatpush1.bf16.msra.mxu0 0
        %622 = vmatprep.subr.bf16.mxu0 0
        %623 = vmatpush1.bf16.msra.mxu0 0
        %624 = vmatprep.subr.bf16.mxu0 0
        %625 = vmatpush1.bf16.msra.mxu0 0
        %626 = vmatprep.subr.bf16.mxu0 0
        %627 = vmatpush1.bf16.msra.mxu0 0
        %628 = vmatprep.mubr.bf16.mxu0 0
        %629 = vmatmul.mubr.bf16.gmra.mrb[0].mxu0 %v509
        %v630 = vpop.f32.mrb[0].mxu0
        %v631 = vadd.f32 0.0, %v630
        %v632 = vpop.f32.mrb[0].mxu0
        %v633 = vpop.f32.mrb[0].mxu0
        %v634 = vadd.f32 0.0, %v633
        %v635 = vpop.f32.mrb[0].mxu0
        %636 = vmatprep.mubr.bf16.mxu0 0
        %637 = vmatmul.mubr.bf16.gmra.mrb[0].mxu0 %v511
        %v638 = vpop.f32.mrb[0].mxu0
        %v639 = vadd.f32 0.0, %v638
        %v640 = vpop.f32.mrb[0].mxu0
        %v641 = vpop.f32.mrb[0].mxu0
        %v642 = vadd.f32 0.0, %v641
        %v643 = vpop.f32.mrb[0].mxu0
        %644 = vmatprep.mubr.bf16.mxu0 0
        %645 = vmatmul.mubr.bf16.gmra.mrb[0].mxu0 %v513
        %v646 = vpop.f32.mrb[0].mxu0
        %v647 = vadd.f32 0.0, %v646
        %v648 = vpop.f32.mrb[0].mxu0
        %v649 = vpop.f32.mrb[0].mxu0
        %v650 = vadd.f32 0.0, %v649
        %v651 = vpop.f32.mrb[0].mxu0
        %652 = vmatprep.mubr.bf16.mxu0 0
        %653 = vmatmul.mubr.bf16.gmra.mrb[0].mxu0 %v515
        %v654 = vpop.f32.mrb[0].mxu0
        %v655 = vadd.f32 0.0, %v654
        %v656 = vpop.f32.mrb[0].mxu0
        %v657 = vpop.f32.mrb[0].mxu0
        %v658 = vadd.f32 0.0, %v657
        %v659 = vpop.f32.mrb[0].mxu0
        %660 = vdwg.mxu0
        %s661 = scalar_lea.vmem %s3, 16
        %v662 = vld [vmem:[%s661] sm:$0xf]
        %v663 = vld [vmem:[%s661 + $0x4] sm:$0x3]
        %v666 = vunpack.c.l.b16 %v662
        %v667 = vunpack.c.l.b16 %v663
        %v668 = vpack.c.b16 %v667, %v666
        %v670 = vsel %vm517, %v668, 0
        %672 = vmatprep.subr.bf16.mxu0 0
        %673 = vmatpush1.bf16.msra.mxu0 %v670
        %674 = vmatprep.subr.bf16.mxu0 0
        %675 = vmatpush1.bf16.msra.mxu0 0
        %676 = vmatprep.subr.bf16.mxu0 0
        %677 = vmatpush1.bf16.msra.mxu0 0
        %678 = vmatprep.subr.bf16.mxu0 0
        %679 = vmatpush1.bf16.msra.mxu0 0
        %680 = vmatprep.subr.bf16.mxu0 0
        %681 = vmatpush1.bf16.msra.mxu0 0
        %682 = vmatprep.subr.bf16.mxu0 0
        %683 = vmatpush1.bf16.msra.mxu0 0
        %684 = vmatprep.subr.bf16.mxu0 0
        %685 = vmatpush1.bf16.msra.mxu0 0
        %686 = vmatprep.subr.bf16.mxu0 0
        %687 = vmatpush1.bf16.msra.mxu0 0
        %688 = vmatprep.subr.bf16.mxu0 0
        %689 = vmatpush1.bf16.msra.mxu0 0
        %690 = vmatprep.subr.bf16.mxu0 0
        %691 = vmatpush1.bf16.msra.mxu0 0
        %692 = vmatprep.subr.bf16.mxu0 0
        %693 = vmatpush1.bf16.msra.mxu0 0
        %694 = vmatprep.subr.bf16.mxu0 0
        %695 = vmatpush1.bf16.msra.mxu0 0
        %696 = vmatprep.subr.bf16.mxu0 0
        %697 = vmatpush1.bf16.msra.mxu0 0
        %698 = vmatprep.subr.bf16.mxu0 0
        %699 = vmatpush1.bf16.msra.mxu0 0
        %700 = vmatprep.subr.bf16.mxu0 0
        %701 = vmatpush1.bf16.msra.mxu0 0
        %702 = vmatprep.subr.bf16.mxu0 0
        %703 = vmatpush1.bf16.msra.mxu0 0
        %704 = vmatprep.mubr.bf16.mxu0 0
        %705 = vmatmul.mubr.bf16.gmra.mrb[0].mxu0 %v509
        %v706 = vpop.f32.mrb[0].mxu0
        %v707 = vadd.f32 0.0, %v706
        %v708 = vpop.f32.mrb[0].mxu0
        %v709 = vpop.f32.mrb[0].mxu0
        %v710 = vadd.f32 0.0, %v709
        %v711 = vpop.f32.mrb[0].mxu0
        %712 = vmatprep.mubr.bf16.mxu0 0
        %713 = vmatmul.mubr.bf16.gmra.mrb[0].mxu0 %v511
        %v714 = vpop.f32.mrb[0].mxu0
        %v715 = vadd.f32 0.0, %v714
        %v716 = vpop.f32.mrb[0].mxu0
        %v717 = vpop.f32.mrb[0].mxu0
        %v718 = vadd.f32 0.0, %v717
        %v719 = vpop.f32.mrb[0].mxu0
        %720 = vmatprep.mubr.bf16.mxu0 0
        %721 = vmatmul.mubr.bf16.gmra.mrb[0].mxu0 %v513
        %v722 = vpop.f32.mrb[0].mxu0
        %v723 = vadd.f32 0.0, %v722
        %v724 = vpop.f32.mrb[0].mxu0
        %v725 = vpop.f32.mrb[0].mxu0
        %v726 = vadd.f32 0.0, %v725
        %v727 = vpop.f32.mrb[0].mxu0
        %728 = vmatprep.mubr.bf16.mxu0 0
        %729 = vmatmul.mubr.bf16.gmra.mrb[0].mxu0 %v515
        %v730 = vpop.f32.mrb[0].mxu0
        %v731 = vadd.f32 0.0, %v730
        %v732 = vpop.f32.mrb[0].mxu0
        %v733 = vpop.f32.mrb[0].mxu0
        %v734 = vadd.f32 0.0, %v733
        %v735 = vpop.f32.mrb[0].mxu0
        %736 = vdwg.mxu0
        %v737 = vlaneseq
        %v738 = vshrl.u32 %v737, 7
        %v739 = vadd.s32 %v738, 8
        %vm740 = vcmp.eq.s32.totalorder %v738, 0
        %vm741 = vcmp.eq.s32.totalorder %v739, 0
        %v742 = vrot.slane %v631, 7
        %v743 = vrot.slane %v639, 7
        %v744 = vrot.slane %v647, 7
        %v745 = vrot.slane %v655, 7
        %v746 = vrot.slane %v634, 7
        %v747 = vrot.slane %v642, 7
        %v748 = vrot.slane %v650, 7
        %v749 = vrot.slane %v658, 7
        %vm750 = vcmp.lt.s32.totalorder %v738, 1
        %v751 = vsel %vm750, %v742, %v746
        %v752 = vsel %vm750, %v743, %v747
        %v753 = vsel %vm750, %v744, %v748
        %v754 = vsel %vm750, %v745, %v749
        %v755 = vsel %vm750, %v746, %v742
        %v756 = vsel %vm750, %v747, %v743
        %v757 = vsel %vm750, %v748, %v744
        %v758 = vsel %vm750, %v749, %v745
        %v759 = vsel %vm740, 0.0, %v755
        %v760 = vsel %vm741, 0.0, %v751
        %v761 = vsel %vm740, 0.0, %v756
        %v762 = vsel %vm741, 0.0, %v752
        %v763 = vsel %vm740, 0.0, %v757
        %v764 = vsel %vm741, 0.0, %v753
        %v765 = vsel %vm740, 0.0, %v758
        %v766 = vsel %vm741, 0.0, %v754
        %vm767 = vcmp.eq.s32.totalorder %v738, 15
        %vm768 = vcmp.eq.s32.totalorder %v739, 15
        %v769 = vrot.slane %v707, 1
        %v770 = vrot.slane %v715, 1
        %v771 = vrot.slane %v723, 1
        %v772 = vrot.slane %v731, 1
        %v773 = vrot.slane %v710, 1
        %v774 = vrot.slane %v718, 1
        %v775 = vrot.slane %v726, 1
        %v776 = vrot.slane %v734, 1
        %vm777 = vcmp.lt.s32.totalorder %v738, 7
        %v778 = vsel %vm777, %v769, %v773
        %v779 = vsel %vm777, %v770, %v774
        %v780 = vsel %vm777, %v771, %v775
        %v781 = vsel %vm777, %v772, %v776
        %v782 = vsel %vm777, %v773, %v769
        %v783 = vsel %vm777, %v774, %v770
        %v784 = vsel %vm777, %v775, %v771
        %v785 = vsel %vm777, %v776, %v772
        %v786 = vsel %vm767, 0.0, %v778
        %v787 = vsel %vm768, 0.0, %v782
        %v788 = vsel %vm767, 0.0, %v779
        %v789 = vsel %vm768, 0.0, %v783
        %v790 = vsel %vm767, 0.0, %v780
        %v791 = vsel %vm768, 0.0, %v784
        %v792 = vsel %vm767, 0.0, %v781
        %v793 = vsel %vm768, 0.0, %v785
        %v794 = vadd.f32 %v556, %v759
        %v795 = vadd.f32 %v559, %v760
        %v796 = vadd.f32 %v564, %v761
        %v797 = vadd.f32 %v567, %v762
        %v798 = vadd.f32 %v572, %v763
        %v799 = vadd.f32 %v575, %v764
        %v800 = vadd.f32 %v580, %v765
        %v801 = vadd.f32 %v583, %v766
        %v802 = vadd.f32 %v794, %v786
        %v803 = vadd.f32 %v795, %v787
        %v804 = vadd.f32 %v796, %v788
        %v805 = vadd.f32 %v797, %v789
        %v806 = vadd.f32 %v798, %v790
        %v807 = vadd.f32 %v799, %v791
        %v808 = vadd.f32 %v800, %v792
        %v809 = vadd.f32 %v801, %v793
        %v810 = vld [vmem:[%s4] sm:$0x1]
        %v812 = vlaneseq
        %v813 = vshrl.u32 %v812, 7
        %v814 = vsub.s32 0, %v813
        %v815 = vrot.slane %v810, %v814
        %v817 = vadd.f32 %v802, %v815
        %v818 = vadd.f32 %v803, %v815
        %v819 = vadd.f32 %v804, %v815
        %v820 = vadd.f32 %v805, %v815
        %v821 = vadd.f32 %v806, %v815
        %v822 = vadd.f32 %v807, %v815
        %v823 = vadd.f32 %v808, %v815
        %v824 = vadd.f32 %v809, %v815
        %vm825 = vcmp.ge.f32.partialorder %v817, 0.0
        %vm826 = vcmp.ge.f32.partialorder %v818, 0.0
        %vm827 = vcmp.ge.f32.partialorder %v819, 0.0
        %vm828 = vcmp.ge.f32.partialorder %v820, 0.0
        %vm829 = vcmp.ge.f32.partialorder %v821, 0.0
        %vm830 = vcmp.ge.f32.partialorder %v822, 0.0
        %vm831 = vcmp.ge.f32.partialorder %v823, 0.0
        %vm832 = vcmp.ge.f32.partialorder %v824, 0.0
        %v833 = vmul.f32 %v817, 0.2
        %v834 = vmul.f32 %v818, 0.2
        %v835 = vmul.f32 %v819, 0.2
        %v836 = vmul.f32 %v820, 0.2
        %v837 = vmul.f32 %v821, 0.2
        %v838 = vmul.f32 %v822, 0.2
        %v839 = vmul.f32 %v823, 0.2
        %v840 = vmul.f32 %v824, 0.2
        %v841 = vsel %vm825, %v817, %v833
        %v842 = vsel %vm826, %v818, %v834
        %v843 = vsel %vm827, %v819, %v835
        %v844 = vsel %vm828, %v820, %v836
        %v845 = vsel %vm829, %v821, %v837
        %v846 = vsel %vm830, %v822, %v838
        %v847 = vsel %vm831, %v823, %v839
        %v848 = vsel %vm832, %v824, %v840
        %v849 = vpack.c.bf16 %v842, %v841
        %v850 = vpack.c.bf16 %v844, %v843
        %v851 = vpack.c.bf16 %v846, %v845
        %v852 = vpack.c.bf16 %v848, %v847
        %v857 = vunpack.c.l.b16 %v849
        %v858 = vunpack.c.h.b16 %v849
        %v859 = vunpack.c.l.b16 %v850
        %v860 = vunpack.c.h.b16 %v850
        %v861 = vunpack.c.l.b16 %v851
        %v862 = vunpack.c.h.b16 %v851
        %v863 = vunpack.c.l.b16 %v852
        %v864 = vunpack.c.h.b16 %v852
        %v865 = vpack.c.b16 %v857, %v857
        %v866 = vpack.c.b16 %v858, %v858
        %v867 = vpack.c.b16 %v859, %v859
        %v868 = vpack.c.b16 %v860, %v860
        %v869 = vpack.c.b16 %v861, %v861
        %v870 = vpack.c.b16 %v862, %v862
        %v871 = vpack.c.b16 %v863, %v863
        %v872 = vpack.c.b16 %v864, %v864
        %vm881 = vcmask 257024
        %882 = vst.msk [vmem:[%s334] sm:$0xf] %vm881, %v865
        %883 = vst.msk [vmem:[%s334 + $0x4] sm:$0xf] %vm881, %v866
        %884 = vst.msk [vmem:[%s334 + $0x8] sm:$0xf] %vm881, %v867
        %885 = vst.msk [vmem:[%s334 + $0xc] sm:$0xf] %vm881, %v868
        %886 = vst.msk [vmem:[%s334 + $0x10] sm:$0xf] %vm881, %v869
        %887 = vst.msk [vmem:[%s334 + $0x14] sm:$0xf] %vm881, %v870
        %888 = vst.msk [vmem:[%s334 + $0x18] sm:$0xf] %vm881, %v871
        %889 = vst.msk [vmem:[%s334 + $0x1c] sm:$0xf] %vm881, %v872
        %s890 = sand.u32 %s183, 1
        %s891 = scalar_lea.sflag [#allocation3], %s890
        %s892 = sand.u32 %s183, 1
        %s893 = smul.addr %s892, 32
        %s894 = scalar_lea.vmem [#allocation2], %s893
        // Predicated region
        $region41: #{tpu_custom_call.1} parent=39 // pred_check
          %p895 = pneg %p193
        $region42: #{tpu_custom_call.1} parent=39 // pred_check_branch
          %897 = sbr.rel (%p895) target = $region44
        $region43: #{tpu_custom_call.1} parent=39 // pred_region
          %s898 = smul.u32 4, %s24
          %s900 = ssub.s32 512, 512
          %901 = vsyncadd %s891, %s900
          %s902 = smul.addr %s898, 2
          %s903 = smul.addr %s23, 32
          %s904 = sadd.s32 %s902, %s903
          %s905 = smul.addr %s904, 64
          %s906 = scalar_lea.hbm %s5, %s905
          %s907 = sshll.u32 %s894, 4
          %s908 = int_to_ptr.vmem [resolvable:$true] %s907
          %913 = dma.vmem_to_hbm [thread:$0]  %s908, 512, %s906, %s891, 64, 64, 4
        $region44: #{tpu_custom_call.1} parent=39 // pred_fallthru
          _
      $region40: #{tpu_custom_call.1} parent=5 // pred_fallthru
        _
      %p914 = scmp.le.s32.totalorder 2, %s14
      // Predicated region
      $region45: #{tpu_custom_call.1} parent=5 // pred_check
        %p915 = pneg %p914
      $region46: #{tpu_custom_call.1} parent=5 // pred_check_branch
        %917 = sbr.rel (%p915) target = $region48
      $region47: #{tpu_custom_call.1} parent=5 // pred_region
        %s918 = ssub.s32 %s14, 2
        // Predicated region
        $region49: #{tpu_custom_call.1} parent=47 // pred_check
          %p919 = pneg %p199
        $region50: #{tpu_custom_call.1} parent=47 // pred_check_branch
          %921 = sbr.rel (%p919) target = $region52
        $region51: #{tpu_custom_call.1} parent=47 // pred_region
          %s922 = sand.u32 %s184, 1
          %s923 = scalar_lea.sflag [#allocation3], %s922
          %s924 = sand.u32 %s184, 1
          %s925 = smul.addr %s924, 32
          %s926 = scalar_lea.vmem [#allocation2], %s925
          %927 = dma.done %s923, 512
        $region52: #{tpu_custom_call.1} parent=47 // pred_fallthru
          _
      $region48: #{tpu_custom_call.1} parent=5 // pred_fallthru
        _
    $region6: #{tpu_custom_call.1} parent=1 // loop_footer
      %s18 = sadd.s32 1, %s14
    $region7: #{tpu_custom_call.1} parent=1 // loop_footer_branch
      %13 = sbr.rel target = $region3
    $region8: #{tpu_custom_call.1} parent=1 // loop_exit
      _
    %928 = vsyncpa [#allocation3], 1
    %s929 = scalar_lea.sflag [#allocation3], 1
    %930 = vsyncpa %s929, 1

</llo_original>
